<compile_context>
chip_gen: v7x
topology: tpu7x:2x2x1
jax: 0.10.0
libtpu: 0.0.40
codegen_flags: <defaults>
</compile_context>

<pallas_src>
import functools
import math

import jax
import jax.numpy as jnp
from jax.experimental import pallas as pl
from jax.experimental.pallas import tpu as pltpu


# ----------------------------------------------------------------------------
# helpers
# ----------------------------------------------------------------------------

def _pick_rows(M, max_rows=512):
    """Largest row-tile <= max_rows that divides M and is a multiple of 8
    (or the full M when M is small / no divisor exists)."""
    if M <= max_rows:
        return M
    t = max_rows - (max_rows % 8)
    while t >= 8:
        if M % t == 0:
            return t
        t -= 8
    return M


def _bf16(x):
    return x.astype(jnp.bfloat16)


# ----------------------------------------------------------------------------
# Pallas kernels
# ----------------------------------------------------------------------------

def _linear_kernel(x_ref, w_ref, b_ref, o_ref, *, relu):
    y = jnp.dot(_bf16(x_ref[...]), _bf16(w_ref[...]),
                preferred_element_type=jnp.float32) + b_ref[...]
    if relu:
        y = jnp.maximum(y, 0.0)
    o_ref[...] = y


def pallas_linear(x, w, b, relu=False):
    """x: (M, K) @ w: (K, N) + b: (N,) -> (M, N); row-tiled, bf16 MXU operands."""
    M, Kd = x.shape
    Nd = w.shape[1]
    tm = _pick_rows(M)
    kern = functools.partial(_linear_kernel, relu=relu)
    return pl.pallas_call(
        kern,
        out_shape=jax.ShapeDtypeStruct((M, Nd), jnp.float32),
        grid=(M // tm,),
        in_specs=[
            pl.BlockSpec((tm, Kd), lambda i: (i, 0)),
            pl.BlockSpec((Kd, Nd), lambda i: (0, 0)),
            pl.BlockSpec((1, Nd), lambda i: (0, 0)),
        ],
        out_specs=pl.BlockSpec((tm, Nd), lambda i: (i, 0)),
        compiler_params=pltpu.CompilerParams(dimension_semantics=("parallel",)),
    )(x.astype(jnp.float32), w.astype(jnp.float32),
      b.reshape(1, Nd).astype(jnp.float32))


def _ln_kernel(x_ref, gb_ref, o_ref):
    x = x_ref[...]
    mu = jnp.mean(x, axis=-1, keepdims=True)
    var = jnp.mean(jnp.square(x - mu), axis=-1, keepdims=True)
    o_ref[...] = (x - mu) * jax.lax.rsqrt(var + 1e-5) * gb_ref[0:1] + gb_ref[1:2]


def pallas_layernorm(x2d, g, b):
    M, C = x2d.shape
    tm = _pick_rows(M)
    gb = jnp.stack([g, b], axis=0)
    return pl.pallas_call(
        _ln_kernel,
        out_shape=jax.ShapeDtypeStruct((M, C), jnp.float32),
        grid=(M // tm,),
        in_specs=[pl.BlockSpec((tm, C), lambda i: (i, 0)),
                  pl.BlockSpec((2, C), lambda i: (0, 0))],
        out_specs=pl.BlockSpec((tm, C), lambda i: (i, 0)),
        compiler_params=pltpu.CompilerParams(dimension_semantics=("parallel",)),
    )(x2d.astype(jnp.float32), gb.astype(jnp.float32))


def _ffn_kernel(x_ref, w1_ref, b1_ref, w2_ref, b2_ref, gb_ref, o_ref):
    x = x_ref[...]
    h = jnp.maximum(jnp.dot(_bf16(x), _bf16(w1_ref[...]),
                            preferred_element_type=jnp.float32) + b1_ref[...], 0.0)
    y = jnp.dot(_bf16(h), _bf16(w2_ref[...]),
                preferred_element_type=jnp.float32) + b2_ref[...]
    s = x + y                                    # residual
    mu = jnp.mean(s, axis=-1, keepdims=True)
    var = jnp.mean(jnp.square(s - mu), axis=-1, keepdims=True)
    o_ref[...] = (s - mu) * jax.lax.rsqrt(var + 1e-5) * gb_ref[0:1] + gb_ref[1:2]


def pallas_ffn_layer(x2d, p):
    """Fused: LayerNorm(x + W2 relu(W1 x + b1) + b2)."""
    M, C = x2d.shape
    dff = p['w1'].shape[1]
    tm = _pick_rows(M)
    gb = jnp.stack([p['norm']['g'], p['norm']['b']], axis=0)
    return pl.pallas_call(
        _ffn_kernel,
        out_shape=jax.ShapeDtypeStruct((M, C), jnp.float32),
        grid=(M // tm,),
        in_specs=[
            pl.BlockSpec((tm, C), lambda i: (i, 0)),
            pl.BlockSpec((C, dff), lambda i: (0, 0)),
            pl.BlockSpec((1, dff), lambda i: (0, 0)),
            pl.BlockSpec((dff, C), lambda i: (0, 0)),
            pl.BlockSpec((1, C), lambda i: (0, 0)),
            pl.BlockSpec((2, C), lambda i: (0, 0)),
        ],
        out_specs=pl.BlockSpec((tm, C), lambda i: (i, 0)),
        compiler_params=pltpu.CompilerParams(dimension_semantics=("parallel",)),
    )(x2d.astype(jnp.float32), p['w1'].astype(jnp.float32),
      p['b1'].reshape(1, dff).astype(jnp.float32),
      p['w2'].astype(jnp.float32), p['b2'].reshape(1, C).astype(jnp.float32),
      gb.astype(jnp.float32))


def _mha_kernel(*refs, nheads, scale, has_mask):
    """Fused MHA for one batch element: QKV proj -> per-head attention ->
    out proj -> residual add -> LayerNorm."""
    if has_mask:
        (q_ref, k_ref, v_ref, r_ref, m_ref,
         wqkv_ref, bqkv_ref, wo_ref, bo_ref, gb_ref, o_ref) = refs
    else:
        (q_ref, k_ref, v_ref, r_ref,
         wqkv_ref, bqkv_ref, wo_ref, bo_ref, gb_ref, o_ref) = refs
        m_ref = None
    C = q_ref.shape[-1]
    Dh = C // nheads
    wqkv = wqkv_ref[...]                         # (C, 3C)
    bqkv = bqkv_ref[...]                         # (1, 3C)

    def proj(xin, s):
        return (jnp.dot(_bf16(xin), _bf16(wqkv[:, s * C:(s + 1) * C]),
                        preferred_element_type=jnp.float32)
                + bqkv[:, s * C:(s + 1) * C])

    q = proj(q_ref[0], 0)                        # (Lq, C)
    k = proj(k_ref[0], 1)                        # (Lk, C)
    v = proj(v_ref[0], 2)                        # (Lk, C)

    if has_mask:
        # int8 mask (0/1); 1 == masked out -> large negative additive bias.
        neg = m_ref[0].astype(jnp.float32) * jnp.float32(-1e30)   # (Lq, Lk)

    heads = []
    for h in range(nheads):
        qh = q[:, h * Dh:(h + 1) * Dh]
        kh = k[:, h * Dh:(h + 1) * Dh]
        vh = v[:, h * Dh:(h + 1) * Dh]
        s = jax.lax.dot_general(_bf16(qh), _bf16(kh), (((1,), (1,)), ((), ())),
                                preferred_element_type=jnp.float32) * scale
        if has_mask:
            s = s + neg
        s = s - jnp.max(s, axis=-1, keepdims=True)
        p = jnp.exp(s)
        p = p * pl.reciprocal(jnp.sum(p, axis=-1, keepdims=True), approx=True)
        heads.append(jnp.dot(_bf16(p), _bf16(vh),
                             preferred_element_type=jnp.float32))
    attn = jnp.concatenate(heads, axis=-1)       # (Lq, C)

    out = (jnp.dot(_bf16(attn), _bf16(wo_ref[...]),
                   preferred_element_type=jnp.float32) + bo_ref[...])
    srs = r_ref[0] + out                         # residual
    mu = jnp.mean(srs, axis=-1, keepdims=True)
    var = jnp.mean(jnp.square(srs - mu), axis=-1, keepdims=True)
    o_ref[0] = ((srs - mu) * jax.lax.rsqrt(var + 1e-5)
                * gb_ref[0:1, :] + gb_ref[1:2, :])


def pallas_mha_layer(q_in, k_in, v_in, residual, p_attn, p_norm, nheads, mask=None):
    """Batch-first fused post-norm attention layer.
    q_in/residual: (B, Lq, C), k_in/v_in: (B, Lk, C),
    mask: (B, Lq, Lk) int8 (nonzero = masked) or None.
    Returns LayerNorm(residual + MHA(q_in, k_in, v_in)) with shape (B, Lq, C)."""
    B, Lq, C = q_in.shape
    Lk = k_in.shape[1]
    Dh = C // nheads
    has_mask = mask is not None
    kern = functools.partial(_mha_kernel, nheads=nheads,
                             scale=1.0 / math.sqrt(Dh), has_mask=has_mask)
    gb = jnp.stack([p_norm['g'], p_norm['b']], axis=0)

    in_specs = [
        pl.BlockSpec((1, Lq, C), lambda b: (b, 0, 0)),
        pl.BlockSpec((1, Lk, C), lambda b: (b, 0, 0)),
        pl.BlockSpec((1, Lk, C), lambda b: (b, 0, 0)),
        pl.BlockSpec((1, Lq, C), lambda b: (b, 0, 0)),
    ]
    args = [q_in.astype(jnp.float32), k_in.astype(jnp.float32),
            v_in.astype(jnp.float32), residual.astype(jnp.float32)]
    if has_mask:
        in_specs.append(pl.BlockSpec((1, Lq, Lk), lambda b: (b, 0, 0)))
        args.append(mask.astype(jnp.int8))
    in_specs += [
        pl.BlockSpec((C, 3 * C), lambda b: (0, 0)),
        pl.BlockSpec((1, 3 * C), lambda b: (0, 0)),
        pl.BlockSpec((C, C), lambda b: (0, 0)),
        pl.BlockSpec((1, C), lambda b: (0, 0)),
        pl.BlockSpec((2, C), lambda b: (0, 0)),
    ]
    args += [p_attn['wqkv'].astype(jnp.float32),
             p_attn['bqkv'].reshape(1, 3 * C).astype(jnp.float32),
             p_attn['wo'].astype(jnp.float32),
             p_attn['bo'].reshape(1, C).astype(jnp.float32),
             gb.astype(jnp.float32)]
    return pl.pallas_call(
        kern,
        out_shape=jax.ShapeDtypeStruct((B, Lq, C), jnp.float32),
        grid=(B,),
        in_specs=in_specs,
        out_specs=pl.BlockSpec((1, Lq, C), lambda b: (b, 0, 0)),
        compiler_params=pltpu.CompilerParams(dimension_semantics=("parallel",)),
    )(*args)


def _mlp3_kernel(x_ref, w1_ref, b1_ref, w2_ref, b2_ref, w3_ref, b3_ref, o_ref,
                 *, final_sigmoid):
    x = x_ref[0]
    h = jnp.maximum(jnp.dot(_bf16(x), _bf16(w1_ref[0]),
                            preferred_element_type=jnp.float32) + b1_ref[0], 0.0)
    h = jnp.maximum(jnp.dot(_bf16(h), _bf16(w2_ref[0]),
                            preferred_element_type=jnp.float32) + b2_ref[0], 0.0)
    y = jnp.dot(_bf16(h), _bf16(w3_ref[0]),
                preferred_element_type=jnp.float32) + b3_ref[0]
    if final_sigmoid:
        y = jax.nn.sigmoid(y)
    o_ref[0] = y


def pallas_mlp3_batched(x, p, final_sigmoid=False):
    """Batched 3-layer MLP (ReLU on first two layers, optional fused sigmoid).
    x: (T, M, C); p[w1]: (T, C, C), p[b1]: (T, 1, C), ..., p[w3]: (T, C, O)."""
    T, M, C = x.shape
    Od = p['w3'].shape[-1]
    kern = functools.partial(_mlp3_kernel, final_sigmoid=final_sigmoid)
    return pl.pallas_call(
        kern,
        out_shape=jax.ShapeDtypeStruct((T, M, Od), jnp.float32),
        grid=(T,),
        in_specs=[
            pl.BlockSpec((1, M, C), lambda i: (i, 0, 0)),
            pl.BlockSpec((1, C, C), lambda i: (i, 0, 0)),
            pl.BlockSpec((1, 1, C), lambda i: (i, 0, 0)),
            pl.BlockSpec((1, C, C), lambda i: (i, 0, 0)),
            pl.BlockSpec((1, 1, C), lambda i: (i, 0, 0)),
            pl.BlockSpec((1, C, Od), lambda i: (i, 0, 0)),
            pl.BlockSpec((1, 1, Od), lambda i: (i, 0, 0)),
        ],
        out_specs=pl.BlockSpec((1, M, Od), lambda i: (i, 0, 0)),
        compiler_params=pltpu.CompilerParams(dimension_semantics=("parallel",)),
    )(x.astype(jnp.float32),
      p['w1'].astype(jnp.float32), p['b1'].astype(jnp.float32),
      p['w2'].astype(jnp.float32), p['b2'].astype(jnp.float32),
      p['w3'].astype(jnp.float32), p['b3'].astype(jnp.float32))


def _mask_head_kernel(me_ref, mf_ref, om_ref, msk_ref, *, apply_fixup):
    """Mask logits (einsum 'bqkc,bchw->bqkhw' as matmuls) fused with the
    attention-mask epilogue: masked = not any_k(logit >= 0), plus the
    all-masked-row fixup (rows fully masked become unmasked)."""
    Kp = me_ref.shape[1]
    mfb = _bf16(mf_ref[0])                                      # (md, HW)
    mx = None
    for k in range(Kp):
        om = jnp.dot(_bf16(me_ref[0, k]), mfb,
                     preferred_element_type=jnp.float32)        # (Q, HW)
        om_ref[0, k] = om
        mx = om if mx is None else jnp.maximum(mx, om)
    masked = mx < 0.0                                           # (Q, HW) bool
    if apply_fixup:
        all_masked = jnp.all(masked, axis=-1, keepdims=True)    # (Q, 1)
        masked = jnp.logical_and(masked, jnp.logical_not(all_masked))
    msk_ref[0] = masked.astype(jnp.int8)


def pallas_mask_head(me, mf_proj, apply_fixup=True):
    """me: (N, Kp, Q, mask_dim), mf_proj: (N, mask_dim, HW)
    -> mask logits (N, Kp, Q, HW) f32 and compact attn mask (N, Q, HW) int8.
    Gridded over the batch dim so per-batch mask features pipeline."""
    N, Kp, Q, md = me.shape
    HW = mf_proj.shape[-1]
    kern = functools.partial(_mask_head_kernel, apply_fixup=apply_fixup)
    return pl.pallas_call(
        kern,
        out_shape=(jax.ShapeDtypeStruct((N, Kp, Q, HW), jnp.float32),
                   jax.ShapeDtypeStruct((N, Q, HW), jnp.int8)),
        grid=(N,),
        in_specs=[pl.BlockSpec((1, Kp, Q, md), lambda b: (b, 0, 0, 0)),
                  pl.BlockSpec((1, md, HW), lambda b: (b, 0, 0))],
        out_specs=(pl.BlockSpec((1, Kp, Q, HW), lambda b: (b, 0, 0, 0)),
                   pl.BlockSpec((1, Q, HW), lambda b: (b, 0, 0))),
        compiler_params=pltpu.CompilerParams(dimension_semantics=("parallel",)),
    )(me.astype(jnp.float32), mf_proj.astype(jnp.float32))


# ----------------------------------------------------------------------------
# Glue: positional encodings, point sampling, prompt encoder (synthetic)
# ----------------------------------------------------------------------------

def fourier_pe(coords01, gaussian):
    c = 2.0 * coords01 - 1.0
    proj = 2.0 * jnp.pi * (c @ gaussian)
    return jnp.concatenate([jnp.sin(proj), jnp.cos(proj)], axis=-1)


def position_embedding_random(x, gaussian):
    N = x.shape[0]
    H, W = x.shape[-2:]
    ys = (jnp.arange(H, dtype=jnp.float32) + 0.5) / H
    xs = (jnp.arange(W, dtype=jnp.float32) + 0.5) / W
    gy, gx = jnp.meshgrid(ys, xs, indexing='ij')
    coords = jnp.stack([gx, gy], axis=-1)
    pe = fourier_pe(coords, gaussian)
    pe = jnp.transpose(pe, (2, 0, 1))
    return jnp.broadcast_to(pe[None], (N,) + pe.shape)


def get_center(points, image_size):
    Hs, Ws = image_size
    centers = []
    for p in points:
        c = (p[..., 2:] + p[..., :2]) / 2.0
        c = c / jnp.array([Ws, Hs], dtype=jnp.float32)
        centers.append(c)
    return jnp.stack(centers, axis=0)


def point_sample(feat, coords):
    """Bilinear grid_sample (align_corners=False, zero padding).
    feat: (N, C, H, W), coords: (N, P, 2) in [0,1] (x, y) -> (N, C, P)."""
    N, C, H, W = feat.shape
    gx = 2.0 * coords[..., 0] - 1.0
    gy = 2.0 * coords[..., 1] - 1.0
    ix = ((gx + 1.0) * W - 1.0) / 2.0
    iy = ((gy + 1.0) * H - 1.0) / 2.0
    x0 = jnp.floor(ix); x1 = x0 + 1.0
    y0 = jnp.floor(iy); y1 = y0 + 1.0
    wx1 = ix - x0; wx0 = 1.0 - wx1
    wy1 = iy - y0; wy0 = 1.0 - wy1

    def gather(xi, yi):
        valid = (xi >= 0) & (xi <= W - 1) & (yi >= 0) & (yi <= H - 1)
        xc = jnp.clip(xi, 0, W - 1).astype(jnp.int32)
        yc = jnp.clip(yi, 0, H - 1).astype(jnp.int32)
        g = feat[jnp.arange(N)[:, None], :, yc, xc]
        return jnp.where(valid[..., None], g, 0.0)

    v = (gather(x0, y0) * (wx0 * wy0)[..., None]
         + gather(x1, y0) * (wx1 * wy0)[..., None]
         + gather(x0, y1) * (wx0 * wy1)[..., None]
         + gather(x1, y1) * (wx1 * wy1)[..., None])
    return jnp.transpose(v, (0, 2, 1))


def sample_center(centers, mask_features):
    fc = point_sample(mask_features, centers)
    return jnp.transpose(fc, (0, 2, 1)), 2


def prompt_encoder_forward(points_c, feature_c, pp):
    # TODO(synk): the upstream prompt_encoder is built from config and not shown;
    # here it is a synthetic SAM-style encoder (prompt tokens = proj(sampled
    # feature) + learned per-token-type embeddings; query_embed = learned tokens
    # + Fourier PE of the prompt centers).  Shapes match the module contract.
    N, Q, C = feature_c.shape
    K = pp['token_embed'].shape[0]
    tok = pallas_linear(feature_c.reshape(N * Q, C), pp['proj_w'], pp['proj_b'])
    tok = tok.reshape(N, Q, C)
    output = jnp.broadcast_to(pp['token_embed'][None, None], (N, Q, K, C))
    output = output.at[:, :, 0, :].add(tok)
    pe_pts = fourier_pe(points_c, pp['pe_gaussian'])
    query_embed = pp['query_tokens'][None, None] + pe_pts[:, :, None, :]
    return output, jnp.broadcast_to(query_embed, (N, Q, K, C))


# ----------------------------------------------------------------------------
# Prediction heads + full decoder forward
# ----------------------------------------------------------------------------

def forward_prediction_heads(output, mf_proj, params, attn_mask_target_size,
                             multimask, num_prompt, mask_dim, mf_hw):
    N, Q, K, C = output.shape
    H, W = mf_hw

    dec = pallas_layernorm(output.reshape(N * Q * K, C),
                           params['decoder_norm']['g'],
                           params['decoder_norm']['b']).reshape(N, Q, K, C)
    dec = dec[:, :, num_prompt:, :]

    if multimask:
        Kp = K - (num_prompt + 1)
        dec = dec[:, :, 1:, :]                                   # (N, Q, Kp, C)
        sl = slice(1, 1 + Kp)
    else:
        Kp = 1
        dec = dec[:, :, :1, :]
        sl = slice(0, 1)

    # batched 3-layer MLP heads (one pallas_call each, grid over tokens)
    x_tok = dec.transpose(2, 0, 1, 3).reshape(Kp, N * Q, C)
    pm = {k: v[sl] for k, v in params['mask_embed'].items()}
    pi = {k: v[sl] for k, v in params['iou_embed'].items()}
    mask_embed = pallas_mlp3_batched(x_tok, pm)                      # (Kp, N*Q, md)
    iou_embed = pallas_mlp3_batched(x_tok, pi, final_sigmoid=True)   # (Kp, N*Q, 1)

    h_t, w_t = attn_mask_target_size
    identity_resize = (h_t, w_t) == (H, W)

    me = mask_embed.reshape(Kp, N, Q, mask_dim).transpose(1, 0, 2, 3)
    om, msk_small = pallas_mask_head(me, mf_proj, apply_fixup=identity_resize)

    outputs_mask = om.transpose(0, 2, 1, 3).reshape(N, Q, Kp, H, W)
    outputs_iou = iou_embed.reshape(Kp, N, Q).transpose(1, 2, 0)

    if identity_resize:
        mask_q = msk_small                                       # (N, Q, HW) int8
    else:
        # TODO(synk): exact F.interpolate(bilinear, align_corners=False) parity is
        # only needed when feature levels differ in resolution from mask_features.
        am = jax.image.resize(outputs_mask, (N, Q, Kp, h_t, w_t), method='bilinear')
        mq = (jnp.max(am, axis=2).reshape(N, Q, h_t * w_t) < 0.0)
        all_masked = jnp.all(mq, axis=-1, keepdims=True)
        mask_q = jnp.logical_and(mq, jnp.logical_not(all_masked)).astype(jnp.int8)
    return outputs_mask, outputs_iou, mask_q


def decoder_forward(params, x_list, mask_features, points, cfg):
    C = cfg['embed_dim']
    nheads = cfg['nheads']
    num_layers = cfg['num_layers']
    mask_dim = cfg['mask_dim']
    NFL = 3
    assert len(x_list) == NFL
    N = x_list[0].shape[0]

    # batch-first memory layout (avoids all seq-first permutes in the loop)
    src, pos, size_list = [], [], []
    for i in range(NFL):
        H, W = x_list[i].shape[-2:]
        size_list.append((H, W))
        pe = position_embedding_random(x_list[i], params['pe_gaussian'])
        pos.append(pe.reshape(N, C, H * W).transpose(0, 2, 1))          # (N, HW, C)
        s = x_list[i].reshape(N, C, H * W).transpose(0, 2, 1)
        src.append(s + params['level_embed'][i][None, None, :])         # input_proj = identity

    # feat_embed (1x1 conv) hoisted: mask_features never changes across layers.
    _, Cm, Hm, Wm = mask_features.shape
    mf2 = mask_features.transpose(0, 2, 3, 1).reshape(N * Hm * Wm, Cm)
    mf2 = pallas_linear(mf2, params['feat_embed']['w'], params['feat_embed']['b'])
    mf_proj = mf2.reshape(N, Hm * Wm, mask_dim).transpose(0, 2, 1)      # (N, md, HW)

    points_c = get_center(points, cfg['image_size'])                    # (N, Q, 2)
    feature_c, K_ = sample_center(points_c, mask_features)              # (N, Q, C), 2
    output, query_embed = prompt_encoder_forward(points_c, feature_c,
                                                 params['prompt_encoder'])
    N, Q, K, _ = output.shape

    predictions_mask, predictions_iou = [], []

    # extra self-attention (batch = N*Q, seq = K, no query_pos, no mask)
    t = output.reshape(N * Q, K, C)
    t = pallas_mha_layer(t, t, t, t, params['extra_self_attn']['attn'],
                         params['extra_self_attn']['norm'], nheads)
    output = t.reshape(N, Q, K, C)

    outputs_mask, outputs_iou, mask_q = forward_prediction_heads(
        output, mf_proj, params, size_list[0], multimask=True,
        num_prompt=K_, mask_dim=mask_dim, mf_hw=(Hm, Wm))
    predictions_mask.append(outputs_mask)
    predictions_iou.append(outputs_iou)

    qe_cross = query_embed.reshape(N, Q * K, C)
    qe_self = query_embed.reshape(N * Q, K, C)

    for i in range(num_layers):
        li = i % NFL
        hw = mask_q.shape[-1]
        # mask_q already has the all-masked-row fixup applied (fused in kernel)
        attn_mask = jnp.broadcast_to(mask_q[:, :, None, :],
                                     (N, Q, K, hw)).reshape(N, Q * K, hw)

        # cross attention (batch = N, Lq = Q*K, Lk = HW), masked, fused residual+LN
        tgt = output.reshape(N, Q * K, C)
        t = pallas_mha_layer(tgt + qe_cross, src[li] + pos[li], src[li], tgt,
                             params['layers'][i]['cross']['attn'],
                             params['layers'][i]['cross']['norm'],
                             nheads, mask=attn_mask)

        # self attention (batch = N*Q, seq = K), fused residual+LN
        t2 = t.reshape(N * Q, K, C)
        q2 = t2 + qe_self
        t2 = pallas_mha_layer(q2, q2, t2, t2,
                              params['layers'][i]['self']['attn'],
                              params['layers'][i]['self']['norm'], nheads)

        # FFN + residual + LN fused
        t3 = pallas_ffn_layer(t2.reshape(N * Q * K, C), params['layers'][i]['ffn'])
        output = t3.reshape(N, Q, K, C)

        outputs_mask, outputs_iou, mask_q = forward_prediction_heads(
            output, mf_proj, params, size_list[(i + 1) % NFL], multimask=True,
            num_prompt=K_, mask_dim=mask_dim, mf_hw=(Hm, Wm))
        predictions_mask.append(outputs_mask)
        predictions_iou.append(outputs_iou)

    assert len(predictions_mask) == num_layers + 1
    return {
        'pred_masks': predictions_mask[-1],
        'pred_ious': predictions_iou[-1],
        'aux_outputs': [{'pred_masks': m, 'pred_ious': u}
                        for m, u in zip(predictions_mask[:-1], predictions_iou[:-1])],
    }


# ----------------------------------------------------------------------------
# Deterministic parameter init (synthetic; shapes follow the module's __init__)
# ----------------------------------------------------------------------------

def init_params(key, cfg):
    C = cfg['embed_dim']; dff = cfg['dim_feedforward']
    L = cfg['num_layers']; mask_dim = cfg['mask_dim']; K = cfg['num_tokens']
    keys = iter(jax.random.split(key, 512))

    def nrm(shape, scale=0.05):
        return scale * jax.random.normal(next(keys), shape, dtype=jnp.float32)

    def mha():
        # fused qkv projection weights: (C, 3C) / (3C,)
        return dict(wqkv=nrm((C, 3 * C)), bqkv=nrm((3 * C,), 0.01),
                    wo=nrm((C, C)), bo=nrm((C,), 0.01))

    def ln():
        return dict(g=jnp.ones((C,), jnp.float32), b=jnp.zeros((C,), jnp.float32))

    def mlp_stack(out_dim, n=5):
        # 5 independent 3-layer MLPs stored stacked (token-batched kernel slices them)
        return dict(w1=nrm((n, C, C)), b1=nrm((n, 1, C), 0.01),
                    w2=nrm((n, C, C)), b2=nrm((n, 1, C), 0.01),
                    w3=nrm((n, C, out_dim)), b3=nrm((n, 1, out_dim), 0.01))

    return dict(
        pe_gaussian=nrm((2, C // 2), 1.0),
        level_embed=nrm((3, C)),
        feat_embed=dict(w=nrm((C, mask_dim)), b=nrm((mask_dim,), 0.01)),
        decoder_norm=ln(),
        mask_embed=mlp_stack(mask_dim),
        iou_embed=mlp_stack(1),
        extra_self_attn=dict(attn=mha(), norm=ln()),
        layers=[dict(self=dict(attn=mha(), norm=ln()),
                     cross=dict(attn=mha(), norm=ln()),
                     ffn=dict(w1=nrm((C, dff)), b1=nrm((dff,), 0.01),
                              w2=nrm((dff, C)), b2=nrm((C,), 0.01), norm=ln()))
                for _ in range(L)],
        prompt_encoder=dict(proj_w=nrm((C, C)), proj_b=nrm((C,), 0.01),
                            token_embed=nrm((K, C)), query_tokens=nrm((K, C)),
                            pe_gaussian=nrm((2, C // 2), 1.0)),
    )


# ----------------------------------------------------------------------------
# Example run
# ----------------------------------------------------------------------------

if __name__ == "__main__":
    cfg = dict(
        embed_dim=32,        # transformer feature dim (divisible by nheads)
        nheads=4,
        dim_feedforward=64,
        num_layers=2,        # dec_layers
        mask_dim=16,
        num_tokens=6,        # K = num_prompt(2) + 1 + 3 multimask tokens
        image_size=(64, 64),
    )
    N, Q = 2, 3

    key = jax.random.PRNGKey(0)
    kp, kx0, kx1, kx2, km, kpt = jax.random.split(key, 6)
    params = init_params(kp, cfg)

    C = cfg['embed_dim']
    x_list = [
        jax.random.normal(kx0, (N, C, 8, 8), jnp.float32),
        jax.random.normal(kx1, (N, C, 8, 8), jnp.float32),
        jax.random.normal(kx2, (N, C, 8, 8), jnp.float32),
    ]
    mask_features = jax.random.normal(km, (N, C, 8, 8), jnp.float32)
    # box prompts in pixel coords of a 64x64 image: (x1, y1, x2, y2)
    pts = jax.random.uniform(kpt, (N, Q, 4), jnp.float32, minval=4.0, maxval=60.0)
    points = [pts[i] for i in range(N)]

    out = decoder_forward(params, x_list, mask_features, points, cfg)
    jax.block_until_ready(out['pred_masks'])
    jax.block_until_ready(out['pred_ious'])
    assert out['pred_masks'].shape == (N, Q, 3, 8, 8)
    assert out['pred_ious'].shape == (N, Q, 3)
    assert len(out['aux_outputs']) == cfg['num_layers']
    print("KERNEL_OK")
</pallas_src>

<mosaic_0001>
module attributes {stable_mosaic.version = 11 : i64} {
  func.func @_linear_kernel(%arg0: i32, %arg1: memref<128x32xf32, #tpu.memory_space<vmem>>, %arg2: memref<32x16xf32, #tpu.memory_space<vmem>>, %arg3: memref<1x16xf32, #tpu.memory_space<vmem>>, %arg4: memref<128x16xf32, #tpu.memory_space<vmem>>) attributes {dimension_semantics = [#tpu.dimension_semantics<parallel>], iteration_bounds = array<i64: 1>, scalar_prefetch = 0 : i64, scratch_operands = 0 : i64, tpu.core_type = #tpu.core_type<tc>, window_params = [{transform_indices = @transform_0, window_bounds = array<i64: 128, 32>}, {pipeline_mode = #tpu.pipeline_mode<synchronous>, transform_indices = @transform_1, window_bounds = array<i64: 32, 16>}, {pipeline_mode = #tpu.pipeline_mode<synchronous>, transform_indices = @transform_2, window_bounds = array<i64: 1, 16>}, {transform_indices = @transform_3, window_bounds = array<i64: 128, 16>}]} {
    %c0 = arith.constant 0 : index
    %c0_0 = arith.constant 0 : index
    %0 = vector.load %arg1[%c0, %c0_0] : memref<128x32xf32, #tpu.memory_space<vmem>>, vector<128x32xf32>
    %1 = arith.truncf %0 : vector<128x32xf32> to vector<128x32xbf16>
    %c0_1 = arith.constant 0 : index
    %c0_2 = arith.constant 0 : index
    %2 = vector.load %arg2[%c0_1, %c0_2] : memref<32x16xf32, #tpu.memory_space<vmem>>, vector<32x16xf32>
    %3 = arith.truncf %2 : vector<32x16xf32> to vector<32x16xbf16>
    %cst = arith.constant dense<0.000000e+00> : vector<128x16xf32>
    %4 = tpu.matmul %1, %3, %cst {dimension_numbers = #tpu.dot_dimension_numbers<[1], [0], [0], [1], [0, 0, 1, 1], [], []>} : vector<128x32xbf16>, vector<32x16xbf16>, vector<128x16xf32> -> vector<128x16xf32>
    %c0_3 = arith.constant 0 : index
    %c0_4 = arith.constant 0 : index
    %5 = vector.load %arg3[%c0_3, %c0_4] : memref<1x16xf32, #tpu.memory_space<vmem>>, vector<1x16xf32>
    %6 = vector.broadcast %5 : vector<1x16xf32> to vector<128x16xf32>
    %7 = arith.addf %4, %6 : vector<128x16xf32>
    %c0_5 = arith.constant 0 : index
    %c0_6 = arith.constant 0 : index
    %8 = vector.load %arg4[%c0_5, %c0_6] : memref<128x16xf32, #tpu.memory_space<vmem>>, vector<128x16xf32>
    tpu.vector_store %arg4[%c0_5, %c0_6], %7 {strides = array<i32>} : memref<128x16xf32, #tpu.memory_space<vmem>>, vector<128x16xf32>,
    return
  }
  func.func @transform_0(%arg0: i32) -> (i32, i32) {
    %c0_i32 = arith.constant 0 : i32
    %c0_i32_0 = arith.constant 0 : i32
    return %arg0, %c0_i32 : i32, i32
  }
  func.func @transform_1(%arg0: i32) -> (i32, i32) {
    %c0_i32 = arith.constant 0 : i32
    %c0_i32_0 = arith.constant 0 : i32
    %c0_i32_1 = arith.constant 0 : i32
    return %c0_i32, %c0_i32_0 : i32, i32
  }
  func.func @transform_2(%arg0: i32) -> (i32, i32) {
    %c0_i32 = arith.constant 0 : i32
    %c0_i32_0 = arith.constant 0 : i32
    %c0_i32_1 = arith.constant 0 : i32
    return %c0_i32, %c0_i32_0 : i32, i32
  }
  func.func @transform_3(%arg0: i32) -> (i32, i32) {
    %c0_i32 = arith.constant 0 : i32
    %c0_i32_0 = arith.constant 0 : i32
    return %arg0, %c0_i32 : i32, i32
  }
}

</mosaic_0001>

<llo_original>
// kernel: tpu_custom_call.1
$region0: #{tpu_custom_call.1}
  #allocation0 [shape = 'u32[]', space=smem, size = 0x4, offset = 0x4, fixed_abs, tag = 'smem constant byte address 0x4 - core index']
  #allocation1 [shape = 'u32[144,128]{1,0:T(1,128)}', space=vmem, size = 0x12000, scoped, tag = 'internal scratch']
  %s0 = inlined_call_operand.vmem [shape: f32[128,32], index: 0, kind: input, shape index: {}]
  %s1 = inlined_call_operand.vmem [shape: f32[32,16], index: 1, kind: input, shape index: {}]
  %s2 = inlined_call_operand.vmem [shape: f32[1,16], index: 2, kind: input, shape index: {}]
  %s3 = inlined_call_operand.vmem [shape: f32[128,16], index: 3, kind: output, shape index: {}]
  %s4 = sld [smem:[#allocation0]]
  $region22: #{tpu_custom_call.1} parent=0
    _
  %s6 = ssub.s32 1, %s4
  %s7 = scalar_select 0, %s6, %s4
  // Predicated region
  $region2: #{tpu_custom_call.1} parent=0 // pred_check
    _
  $region3: #{tpu_custom_call.1} parent=0 // pred_check_branch
    %9 = sbr.rel (0) target = $region5
  $region4: #{tpu_custom_call.1} parent=0 // pred_region
    _
  $region5: #{tpu_custom_call.1} parent=0 // pred_fallthru
    _
  // Predicated region
  $region6: #{tpu_custom_call.1} parent=0 // pred_check
    _
  $region7: #{tpu_custom_call.1} parent=0 // pred_check_branch
    %11 = sbr.rel (0) target = $region9
  $region8: #{tpu_custom_call.1} parent=0 // pred_region
    _
  $region9: #{tpu_custom_call.1} parent=0 // pred_fallthru
    _
  // Predicated region
  $region10: #{tpu_custom_call.1} parent=0 // pred_check
    _
  $region11: #{tpu_custom_call.1} parent=0 // pred_check_branch
    %13 = sbr.rel (0) target = $region13
  $region12: #{tpu_custom_call.1} parent=0 // pred_region
    _
  $region13: #{tpu_custom_call.1} parent=0 // pred_fallthru
    _
  %v15 = vld [vmem:[%s0] sm:$0xff]
  %v16 = vld [vmem:[%s0 + $0x8] sm:$0xff]
  %v17 = vld [vmem:[%s0 + $0x10] sm:$0xff]
  %v18 = vld [vmem:[%s0 + $0x18] sm:$0xff]
  %v19 = vld [vmem:[%s0 + $0x20] sm:$0xff]
  %v20 = vld [vmem:[%s0 + $0x28] sm:$0xff]
  %v21 = vld [vmem:[%s0 + $0x30] sm:$0xff]
  %v22 = vld [vmem:[%s0 + $0x38] sm:$0xff]
  %v23 = vld [vmem:[%s0 + $0x40] sm:$0xff]
  %v24 = vld [vmem:[%s0 + $0x48] sm:$0xff]
  %v25 = vld [vmem:[%s0 + $0x50] sm:$0xff]
  %v26 = vld [vmem:[%s0 + $0x58] sm:$0xff]
  %v27 = vld [vmem:[%s0 + $0x60] sm:$0xff]
  %v28 = vld [vmem:[%s0 + $0x68] sm:$0xff]
  %v29 = vld [vmem:[%s0 + $0x70] sm:$0xff]
  %v30 = vld [vmem:[%s0 + $0x78] sm:$0xff]
  %v31 = vpack.c.bf16 %v16, %v15
  %v32 = vpack.c.bf16 %v18, %v17
  %v33 = vpack.c.bf16 %v20, %v19
  %v34 = vpack.c.bf16 %v22, %v21
  %v35 = vpack.c.bf16 %v24, %v23
  %v36 = vpack.c.bf16 %v26, %v25
  %v37 = vpack.c.bf16 %v28, %v27
  %v38 = vpack.c.bf16 %v30, %v29
  %v39 = vld [vmem:[%s1] sm:$0xff]
  %v40 = vld [vmem:[%s1 + $0x8] sm:$0xff]
  %v41 = vld [vmem:[%s1 + $0x10] sm:$0xff]
  %v42 = vld [vmem:[%s1 + $0x18] sm:$0xff]
  %v43 = vpack.c.bf16 %v40, %v39
  %v44 = vpack.c.bf16 %v42, %v41
  %v45 = vld [vmem:[%s2] sm:$0x1]
  %v47 = vlaneseq
  %v48 = vshrl.u32 %v47, 7
  %v49 = vsub.s32 0, %v48
  %v50 = vrot.slane %v45, %v49
  %vm52 = vcmask 261120
  %v54 = vsel %vm52, %v31, 0
  %v57 = vsel %vm52, %v32, 0
  %v60 = vsel %vm52, %v33, 0
  %v63 = vsel %vm52, %v34, 0
  %v66 = vsel %vm52, %v35, 0
  %v69 = vsel %vm52, %v36, 0
  %v72 = vsel %vm52, %v37, 0
  %v75 = vsel %vm52, %v38, 0
  %77 = vmatprep.subr.bf16.mxu0 0
  %78 = vmatpush1.bf16.msra.mxu0 %v43
  %79 = vmatprep.subr.bf16.mxu0 0
  %80 = vmatpush1.bf16.msra.mxu0 %v44
  %81 = vmatprep.subr.bf16.mxu0 0
  %82 = vmatpush1.bf16.msra.mxu0 0
  %83 = vmatprep.subr.bf16.mxu0 0
  %84 = vmatpush1.bf16.msra.mxu0 0
  %85 = vmatprep.subr.bf16.mxu0 0
  %86 = vmatpush1.bf16.msra.mxu0 0
  %87 = vmatprep.subr.bf16.mxu0 0
  %88 = vmatpush1.bf16.msra.mxu0 0
  %89 = vmatprep.subr.bf16.mxu0 0
  %90 = vmatpush1.bf16.msra.mxu0 0
  %91 = vmatprep.subr.bf16.mxu0 0
  %92 = vmatpush1.bf16.msra.mxu0 0
  %93 = vmatprep.subr.bf16.mxu0 0
  %94 = vmatpush1.bf16.msra.mxu0 0
  %95 = vmatprep.subr.bf16.mxu0 0
  %96 = vmatpush1.bf16.msra.mxu0 0
  %97 = vmatprep.subr.bf16.mxu0 0
  %98 = vmatpush1.bf16.msra.mxu0 0
  %99 = vmatprep.subr.bf16.mxu0 0
  %100 = vmatpush1.bf16.msra.mxu0 0
  %101 = vmatprep.subr.bf16.mxu0 0
  %102 = vmatpush1.bf16.msra.mxu0 0
  %103 = vmatprep.subr.bf16.mxu0 0
  %104 = vmatpush1.bf16.msra.mxu0 0
  %105 = vmatprep.subr.bf16.mxu0 0
  %106 = vmatpush1.bf16.msra.mxu0 0
  %107 = vmatprep.subr.bf16.mxu0 0
  %108 = vmatpush1.bf16.msra.mxu0 0
  %109 = vmatprep.mubr.bf16.mxu0 0
  %110 = vmatmul.mubr.bf16.gmra.mrb[0].mxu0 %v54
  %v111 = vpop.f32.mrb[0].mxu0
  %v112 = vadd.f32 %v50, %v111
  %v113 = vpop.f32.mrb[0].mxu0
  %v114 = vpop.f32.mrb[0].mxu0
  %v115 = vadd.f32 %v50, %v114
  %v116 = vpop.f32.mrb[0].mxu0
  %117 = vmatprep.mubr.bf16.mxu0 0
  %118 = vmatmul.mubr.bf16.gmra.mrb[0].mxu0 %v57
  %v119 = vpop.f32.mrb[0].mxu0
  %v120 = vadd.f32 %v50, %v119
  %v121 = vpop.f32.mrb[0].mxu0
  %v122 = vpop.f32.mrb[0].mxu0
  %v123 = vadd.f32 %v50, %v122
  %v124 = vpop.f32.mrb[0].mxu0
  %125 = vmatprep.mubr.bf16.mxu0 0
  %126 = vmatmul.mubr.bf16.gmra.mrb[0].mxu0 %v60
  %v127 = vpop.f32.mrb[0].mxu0
  %v128 = vadd.f32 %v50, %v127
  %v129 = vpop.f32.mrb[0].mxu0
  %v130 = vpop.f32.mrb[0].mxu0
  %v131 = vadd.f32 %v50, %v130
  %v132 = vpop.f32.mrb[0].mxu0
  %133 = vmatprep.mubr.bf16.mxu0 0
  %134 = vmatmul.mubr.bf16.gmra.mrb[0].mxu0 %v63
  %v135 = vpop.f32.mrb[0].mxu0
  %v136 = vadd.f32 %v50, %v135
  %v137 = vpop.f32.mrb[0].mxu0
  %v138 = vpop.f32.mrb[0].mxu0
  %v139 = vadd.f32 %v50, %v138
  %v140 = vpop.f32.mrb[0].mxu0
  %141 = vmatprep.mubr.bf16.mxu0 0
  %142 = vmatmul.mubr.bf16.gmra.mrb[0].mxu0 %v66
  %v143 = vpop.f32.mrb[0].mxu0
  %v144 = vadd.f32 %v50, %v143
  %v145 = vpop.f32.mrb[0].mxu0
  %v146 = vpop.f32.mrb[0].mxu0
  %v147 = vadd.f32 %v50, %v146
  %v148 = vpop.f32.mrb[0].mxu0
  %149 = vmatprep.mubr.bf16.mxu0 0
  %150 = vmatmul.mubr.bf16.gmra.mrb[0].mxu0 %v69
  %v151 = vpop.f32.mrb[0].mxu0
  %v152 = vadd.f32 %v50, %v151
  %v153 = vpop.f32.mrb[0].mxu0
  %v154 = vpop.f32.mrb[0].mxu0
  %v155 = vadd.f32 %v50, %v154
  %v156 = vpop.f32.mrb[0].mxu0
  %157 = vmatprep.mubr.bf16.mxu0 0
  %158 = vmatmul.mubr.bf16.gmra.mrb[0].mxu0 %v72
  %v159 = vpop.f32.mrb[0].mxu0
  %v160 = vadd.f32 %v50, %v159
  %v161 = vpop.f32.mrb[0].mxu0
  %v162 = vpop.f32.mrb[0].mxu0
  %v163 = vadd.f32 %v50, %v162
  %v164 = vpop.f32.mrb[0].mxu0
  %165 = vmatprep.mubr.bf16.mxu0 0
  %166 = vmatmul.mubr.bf16.gmra.mrb[0].mxu0 %v75
  %v167 = vpop.f32.mrb[0].mxu0
  %v168 = vadd.f32 %v50, %v167
  %v169 = vpop.f32.mrb[0].mxu0
  %v170 = vpop.f32.mrb[0].mxu0
  %v171 = vadd.f32 %v50, %v170
  %v172 = vpop.f32.mrb[0].mxu0
  %173 = vdwg.mxu0
  %vm174 = vcmask 130048
  %175 = vst.msk [vmem:[%s3] sm:$0xff] %vm174, %v112
  %176 = vst.msk [vmem:[%s3 + $0x8] sm:$0xff] %vm174, %v115
  %177 = vst.msk [vmem:[%s3 + $0x10] sm:$0xff] %vm174, %v120
  %178 = vst.msk [vmem:[%s3 + $0x18] sm:$0xff] %vm174, %v123
  %179 = vst.msk [vmem:[%s3 + $0x20] sm:$0xff] %vm174, %v128
  %180 = vst.msk [vmem:[%s3 + $0x28] sm:$0xff] %vm174, %v131
  %181 = vst.msk [vmem:[%s3 + $0x30] sm:$0xff] %vm174, %v136
  %182 = vst.msk [vmem:[%s3 + $0x38] sm:$0xff] %vm174, %v139
  %183 = vst.msk [vmem:[%s3 + $0x40] sm:$0xff] %vm174, %v144
  %184 = vst.msk [vmem:[%s3 + $0x48] sm:$0xff] %vm174, %v147
  %185 = vst.msk [vmem:[%s3 + $0x50] sm:$0xff] %vm174, %v152
  %186 = vst.msk [vmem:[%s3 + $0x58] sm:$0xff] %vm174, %v155
  %187 = vst.msk [vmem:[%s3 + $0x60] sm:$0xff] %vm174, %v160
  %188 = vst.msk [vmem:[%s3 + $0x68] sm:$0xff] %vm174, %v163
  %189 = vst.msk [vmem:[%s3 + $0x70] sm:$0xff] %vm174, %v168
  %190 = vst.msk [vmem:[%s3 + $0x78] sm:$0xff] %vm174, %v171
  // Predicated region
  $region14: #{tpu_custom_call.1} parent=0 // pred_check
    _
  $region15: #{tpu_custom_call.1} parent=0 // pred_check_branch
    %192 = sbr.rel (0) target = $region17
  $region16: #{tpu_custom_call.1} parent=0 // pred_region
    _
  $region17: #{tpu_custom_call.1} parent=0 // pred_fallthru
    _
  // Predicated region
  $region18: #{tpu_custom_call.1} parent=0 // pred_check
    _
  $region19: #{tpu_custom_call.1} parent=0 // pred_check_branch
    %194 = sbr.rel (0) target = $region21
  $region20: #{tpu_custom_call.1} parent=0 // pred_region
    _
  $region21: #{tpu_custom_call.1} parent=0 // pred_fallthru
    _

</llo_original>
